<compile_context>
chip_gen: v7x
topology: tpu7x:2x2x1
jax: 0.10.0
libtpu: 0.0.40
codegen_flags: <defaults>
</compile_context>

<pallas_src>
import functools

import jax
import jax.numpy as jnp
from jax.experimental import pallas as pl
from jax.experimental.pallas import tpu as pltpu


# ----------------------------- Pallas kernel -------------------------------

def outconv_kernel(x_ref, w_ref, b_ref, o_ref):
    # x: (Cin, TM)  w: (Cout, Cin)  b: (Cout, 1)  out: (Cout, TM)
    y = jnp.dot(w_ref[...], x_ref[...], preferred_element_type=jnp.float32)
    o_ref[...] = (y + b_ref[...]).astype(o_ref.dtype)


# ------------------------------ JAX wrapper ---------------------------------

def _pick_block_m(dhw, desired):
    """Legal lane-dim block size: multiple of 128 or the full extent."""
    if dhw % 128 != 0:
        return dhw                      # full-extent block, always legal
    return min(desired, dhw)            # desired is a multiple of 128


@functools.partial(jax.jit, static_argnames=("tm",))
def outconv_forward(x, w, b, *, tm=131072):
    """OutConv.forward: x (N,Cin,D,H,W), w (Cout,Cin,1,1,1), b (Cout,) -> (N,Cout,D,H,W)."""
    n, cin, d, h, w_sp = x.shape
    cout = w.shape[0]
    dhw = d * h * w_sp

    # Free reshape on the native NCDHW layout: no HBM transpose, no pad.
    x3 = x.reshape(n, cin, dhw).astype(jnp.float32)
    w2d = w.reshape(cout, cin).astype(jnp.float32)
    b2d = b.reshape(cout, 1).astype(jnp.float32)

    block_m = _pick_block_m(dhw, tm)
    grid = (n, pl.cdiv(dhw, block_m))   # boundary block masked by Pallas

    y3 = pl.pallas_call(
        outconv_kernel,
        out_shape=jax.ShapeDtypeStruct((n, cout, dhw), jnp.float32),
        grid_spec=pltpu.PrefetchScalarGridSpec(
            num_scalar_prefetch=0,
            grid=grid,
            in_specs=[
                # Activations tile: batch dim squeezed, (Cin, TM) in-kernel.
                pl.BlockSpec((None, cin, block_m), lambda nn, i: (nn, 0, i)),
                # Weight / bias: tiny, VMEM-resident via constant index_map.
                pl.BlockSpec((cout, cin), lambda nn, i: (0, 0)),
                pl.BlockSpec((cout, 1), lambda nn, i: (0, 0)),
            ],
            out_specs=pl.BlockSpec((None, cout, block_m),
                                   lambda nn, i: (nn, 0, i)),
        ),
        compiler_params=pltpu.CompilerParams(
            # Both axes independent -> megacore sharding on v7x.
            dimension_semantics=("parallel", "parallel"),
            # > v5e/v6e scoped defaults, < v7x's 64 MiB physical VMEM.
            vmem_limit_bytes=48 * 1024 * 1024,
        ),
    )(x3, w2d, b2d)

    return y3.reshape(n, cout, d, h, w_sp)  # free reshape, already NCDHW


# --------------------------------- main --------------------------------------

if __name__ == "__main__":
    N, C_IN, C_OUT = 2, 4, 8
    D = H = W = 16  # DHW = 4096 -> single 4096-wide M tile per batch element

    key = jax.random.PRNGKey(0)
    ks = jax.random.split(key, 3)

    x = jax.random.normal(ks[0], (N, C_IN, D, H, W), jnp.float32)
    w = 0.1 * jax.random.normal(ks[1], (C_OUT, C_IN, 1, 1, 1), jnp.float32)
    b = 0.1 * jax.random.normal(ks[2], (C_OUT,), jnp.float32)

    out = outconv_forward(x, w, b)
    out = jax.block_until_ready(out)

    # Reference: 1x1x1 conv == per-voxel linear map.
    ref = jnp.einsum("ncdhw,oc->nodhw", x, w.reshape(C_OUT, C_IN)) \
        + b.reshape(1, C_OUT, 1, 1, 1)

    assert out.shape == (N, C_OUT, D, H, W), out.shape
    assert bool(jnp.all(jnp.isfinite(out)))
    assert bool(jnp.allclose(out, ref, rtol=1e-4, atol=1e-4)), \
        float(jnp.max(jnp.abs(out - ref)))
    print("KERNEL_OK")
</pallas_src>

<mosaic_0001>
module attributes {stable_mosaic.version = 11 : i64} {
  func.func @outconv_kernel(%arg0: i32, %arg1: i32, %arg2: memref<1x4x4096xf32, #tpu.memory_space<vmem>>, %arg3: memref<8x4xf32, #tpu.memory_space<vmem>>, %arg4: memref<8x1xf32, #tpu.memory_space<vmem>>, %arg5: memref<1x8x4096xf32, #tpu.memory_space<vmem>>) attributes {dimension_semantics = [#tpu.dimension_semantics<parallel>, #tpu.dimension_semantics<parallel>], iteration_bounds = array<i64: 2, 1>, scalar_prefetch = 0 : i64, scratch_operands = 0 : i64, tpu.core_type = #tpu.core_type<tc>, window_params = [{transform_indices = @transform_0, window_bounds = array<i64: 1, 4, 4096>}, {pipeline_mode = #tpu.pipeline_mode<synchronous>, transform_indices = @transform_1, window_bounds = array<i64: 8, 4>}, {pipeline_mode = #tpu.pipeline_mode<synchronous>, transform_indices = @transform_2, window_bounds = array<i64: 8, 1>}, {transform_indices = @transform_3, window_bounds = array<i64: 1, 8, 4096>}]} {
    %c0 = arith.constant 0 : index
    %c0_0 = arith.constant 0 : index
    %0 = vector.load %arg3[%c0, %c0_0] : memref<8x4xf32, #tpu.memory_space<vmem>>, vector<8x4xf32>
    %c0_1 = arith.constant 0 : index
    %c0_2 = arith.constant 0 : index
    %c0_3 = arith.constant 0 : index
    %1 = vector.load %arg2[%c0_1, %c0_2, %c0_3] : memref<1x4x4096xf32, #tpu.memory_space<vmem>>, vector<1x4x4096xf32>
    %2 = vector.shape_cast %1 : vector<1x4x4096xf32> to vector<4x4096xf32>
    %cst = arith.constant dense<0.000000e+00> : vector<8x4096xf32>
    %3 = tpu.matmul %0, %2, %cst {dimension_numbers = #tpu.dot_dimension_numbers<[1], [0], [0], [1], [0, 0, 1, 1], [], []>} : vector<8x4xf32>, vector<4x4096xf32>, vector<8x4096xf32> -> vector<8x4096xf32>
    %c0_4 = arith.constant 0 : index
    %c0_5 = arith.constant 0 : index
    %4 = vector.load %arg4[%c0_4, %c0_5] : memref<8x1xf32, #tpu.memory_space<vmem>>, vector<8x1xf32>
    %5 = vector.broadcast %4 : vector<8x1xf32> to vector<8x4096xf32>
    %6 = arith.addf %3, %5 : vector<8x4096xf32>
    %c0_6 = arith.constant 0 : index
    %c0_7 = arith.constant 0 : index
    %c0_8 = arith.constant 0 : index
    %7 = vector.load %arg5[%c0_6, %c0_7, %c0_8] : memref<1x8x4096xf32, #tpu.memory_space<vmem>>, vector<1x8x4096xf32>
    %8 = vector.shape_cast %7 : vector<1x8x4096xf32> to vector<8x4096xf32>
    %9 = vector.shape_cast %6 : vector<8x4096xf32> to vector<1x8x4096xf32>
    tpu.vector_store %arg5[%c0_6, %c0_7, %c0_8], %9 {strides = array<i32>} : memref<1x8x4096xf32, #tpu.memory_space<vmem>>, vector<1x8x4096xf32>,
    return
  }
  func.func @transform_0(%arg0: i32, %arg1: i32) -> (i32, i32, i32) {
    %c0_i32 = arith.constant 0 : i32
    %c0_i32_0 = arith.constant 0 : i32
    return %arg0, %c0_i32, %arg1 : i32, i32, i32
  }
  func.func @transform_1(%arg0: i32, %arg1: i32) -> (i32, i32) {
    %c0_i32 = arith.constant 0 : i32
    %c0_i32_0 = arith.constant 0 : i32
    %c0_i32_1 = arith.constant 0 : i32
    return %c0_i32, %c0_i32_0 : i32, i32
  }
  func.func @transform_2(%arg0: i32, %arg1: i32) -> (i32, i32) {
    %c0_i32 = arith.constant 0 : i32
    %c0_i32_0 = arith.constant 0 : i32
    %c0_i32_1 = arith.constant 0 : i32
    return %c0_i32, %c0_i32_0 : i32, i32
  }
  func.func @transform_3(%arg0: i32, %arg1: i32) -> (i32, i32, i32) {
    %c0_i32 = arith.constant 0 : i32
    %c0_i32_0 = arith.constant 0 : i32
    return %arg0, %c0_i32, %arg1 : i32, i32, i32
  }
}

</mosaic_0001>

<llo_original>
// kernel: outconv_forward.1
$region0: #{outconv_forward.1}
  #allocation0 [shape = 'u32[]', space=smem, size = 0x4, offset = 0x4, fixed_abs, tag = 'smem constant byte address 0x4 - core index']
  #allocation1 [shape = 'u32[144,128]{1,0:T(1,128)}', space=vmem, size = 0x12000, scoped, tag = 'internal scratch']
  %s0 = inlined_call_operand.vmem [shape: f32[2,4,4096], index: 0, kind: input, shape index: {}]
  %s1 = inlined_call_operand.vmem [shape: f32[8,4], index: 1, kind: input, shape index: {}]
  %s2 = inlined_call_operand.vmem [shape: f32[8,1], index: 2, kind: input, shape index: {}]
  %s3 = inlined_call_operand.vmem [shape: f32[2,8,4096], index: 3, kind: output, shape index: {}]
  %s4 = sld [smem:[#allocation0]]
  $region45: #{outconv_forward.1} parent=0
    _
  %s6 = ssub.s32 1, %s4
  %s7 = scalar_select 0, %s6, %s4
  loop: start=0, step=1, limit=4
  $region2: #{outconv_forward.1} parent=0 // loop_pre_header
    _
  $region3: #{outconv_forward.1} parent=0 // loop_header
    %s9 = sphi 0, %s13
    %p10 = scmp.ge.s32.totalorder %s9, 4
    %s16 = sphi 0, %s28
    %s17 = sphi 0, %s24
    %s18 = sphi 0, %s16
    %s19 = sphi 0, %s17
    %s20 = sphi 0, %s18
    %s21 = sphi 0, %s19
    %s33 = sphi 0, %s35
    %s36 = sphi 0, %s33
    %s37 = sphi 0, %s36
    %s53 = sphi 0, %s37
    %s57 = sphi 0, %s57
    %s59 = sphi 0, %s57
    %s60 = sphi 0, %s59
    %s74 = sphi 0, %s60
    %s78 = sphi 0, %s78
    %s80 = sphi 0, %s78
    %s81 = sphi 0, %s80
    %s95 = sphi 0, %s81
    %s103 = sphi 0, %s105
    %s106 = sphi 0, %s103
    %s107 = sphi 0, %s106
    %s123 = sphi 0, %s107
  $region4: #{outconv_forward.1} parent=0 // loop_header_branch
    %12 = sbr.rel (%p10) target = $region8
  $region5: #{outconv_forward.1} parent=0 // loop_body
    %s14 = ssub.s32 %s9, 1
    %s15 = ssub.s32 %s9, 2
    %s22 = sadd.s32 1, %s17
    %p23 = scmp.ge.s32.totalorder %s22, 1
    %s24 = scalar_select %p23, 0, %s22
    %s25 = sadd.s32 1, %s16
    %s26 = scalar_select %p23, %s25, %s16
    %p27 = scmp.ge.s32.totalorder %s26, 2
    %s28 = scalar_select %p27, 0, %s26
    %s29 = ssub.s32 %s16, %s28
    %s30 = ssub.s32 %s17, %s24
    %s31 = sor.u32 %s29, %s30
    %p32 = scmp.eq.s32.totalorder %s31, 0
    %s34 = sadd.s32 %s33, 1
    %s35 = scalar_select %p32, %s33, %s34
    %p38 = pneg %p32
    %p39 = scmp.eq.s32.totalorder %s9, 1
    %p40 = por %p38, %p39
    %p41 = scmp.ne.s32.totalorder %s33, %s36
    %p42 = scmp.eq.s32.totalorder %s9, 0
    %p43 = por %p41, %p42
    %p44 = scmp.ne.s32.totalorder %s33, %s36
    %p45 = scmp.eq.s32.totalorder %s14, 1
    %p46 = por %p44, %p45
    %p47 = scmp.ne.s32.totalorder %s36, %s37
    %p48 = scmp.eq.s32.totalorder %s14, 0
    %p49 = por %p47, %p48
    %p50 = scmp.ne.s32.totalorder %s36, %s37
    %p51 = scmp.eq.s32.totalorder %s15, 1
    %p52 = por %p50, %p51
    %p54 = scmp.ne.s32.totalorder %s37, %s53
    %p55 = scmp.eq.s32.totalorder %s15, 0
    %p56 = por %p54, %p55
    %s58 = sadd.s32 %s57, 1
    %p61 = scmp.eq.s32.totalorder %s9, 1
    %p62 = scmp.ne.s32.totalorder %s57, %s59
    %p63 = scmp.eq.s32.totalorder %s9, 0
    %p64 = por %p62, %p63
    %p65 = scmp.ne.s32.totalorder %s57, %s59
    %p66 = scmp.eq.s32.totalorder %s14, 1
    %p67 = por %p65, %p66
    %p68 = scmp.ne.s32.totalorder %s59, %s60
    %p69 = scmp.eq.s32.totalorder %s14, 0
    %p70 = por %p68, %p69
    %p71 = scmp.ne.s32.totalorder %s59, %s60
    %p72 = scmp.eq.s32.totalorder %s15, 1
    %p73 = por %p71, %p72
    %p75 = scmp.ne.s32.totalorder %s60, %s74
    %p76 = scmp.eq.s32.totalorder %s15, 0
    %p77 = por %p75, %p76
    %s79 = sadd.s32 %s78, 1
    %p82 = scmp.eq.s32.totalorder %s9, 1
    %p83 = scmp.ne.s32.totalorder %s78, %s80
    %p84 = scmp.eq.s32.totalorder %s9, 0
    %p85 = por %p83, %p84
    %p86 = scmp.ne.s32.totalorder %s78, %s80
    %p87 = scmp.eq.s32.totalorder %s14, 1
    %p88 = por %p86, %p87
    %p89 = scmp.ne.s32.totalorder %s80, %s81
    %p90 = scmp.eq.s32.totalorder %s14, 0
    %p91 = por %p89, %p90
    %p92 = scmp.ne.s32.totalorder %s80, %s81
    %p93 = scmp.eq.s32.totalorder %s15, 1
    %p94 = por %p92, %p93
    %p96 = scmp.ne.s32.totalorder %s81, %s95
    %p97 = scmp.eq.s32.totalorder %s15, 0
    %p98 = por %p96, %p97
    %s99 = ssub.s32 %s16, %s28
    %s100 = ssub.s32 %s17, %s24
    %s101 = sor.u32 %s99, %s100
    %p102 = scmp.eq.s32.totalorder %s101, 0
    %s104 = sadd.s32 %s103, 1
    %s105 = scalar_select %p102, %s103, %s104
    %p108 = pneg %p102
    %p109 = scmp.eq.s32.totalorder %s9, 1
    %p110 = por %p108, %p109
    %p111 = scmp.ne.s32.totalorder %s103, %s106
    %p112 = scmp.eq.s32.totalorder %s9, 0
    %p113 = por %p111, %p112
    %p114 = scmp.ne.s32.totalorder %s103, %s106
    %p115 = scmp.eq.s32.totalorder %s14, 1
    %p116 = por %p114, %p115
    %p117 = scmp.ne.s32.totalorder %s106, %s107
    %p118 = scmp.eq.s32.totalorder %s14, 0
    %p119 = por %p117, %p118
    %p120 = scmp.ne.s32.totalorder %s106, %s107
    %p121 = scmp.eq.s32.totalorder %s15, 1
    %p122 = por %p120, %p121
    %p124 = scmp.ne.s32.totalorder %s107, %s123
    %p125 = scmp.eq.s32.totalorder %s15, 0
    %p126 = por %p124, %p125
    %p127 = scmp.le.s32.totalorder 1, %s9
    %p128 = scmp.lt.s32.totalorder %s9, 3
    %p129 = pnand %p127, %p128
    %p130 = pneg %p129
    // Predicated region
    $region9: #{outconv_forward.1} parent=5 // pred_check
      _
    $region10: #{outconv_forward.1} parent=5 // pred_check_branch
      %132 = sbr.rel (%p129) target = $region12
    $region11: #{outconv_forward.1} parent=5 // pred_region
      %s133 = ssub.s32 %s9, 1
      // Predicated region
      $region13: #{outconv_forward.1} parent=11 // pred_check
        %p134 = pneg %p70
      $region14: #{outconv_forward.1} parent=11 // pred_check_branch
        %136 = sbr.rel (%p134) target = $region16
      $region15: #{outconv_forward.1} parent=11 // pred_region
        _
      $region16: #{outconv_forward.1} parent=11 // pred_fallthru
        _
      // Predicated region
      $region17: #{outconv_forward.1} parent=11 // pred_check
        %p137 = pneg %p91
      $region18: #{outconv_forward.1} parent=11 // pred_check_branch
        %139 = sbr.rel (%p137) target = $region20
      $region19: #{outconv_forward.1} parent=11 // pred_region
        _
      $region20: #{outconv_forward.1} parent=11 // pred_fallthru
        _
    $region12: #{outconv_forward.1} parent=5 // pred_fallthru
      _
    %p140 = scmp.lt.s32.totalorder %s9, 2
    // Predicated region
    $region21: #{outconv_forward.1} parent=5 // pred_check
      %p141 = pneg %p140
    $region22: #{outconv_forward.1} parent=5 // pred_check_branch
      %143 = sbr.rel (%p141) target = $region24
    $region23: #{outconv_forward.1} parent=5 // pred_region
      // Predicated region
      $region25: #{outconv_forward.1} parent=23 // pred_check
        %p144 = pneg %p43
      $region26: #{outconv_forward.1} parent=23 // pred_check_branch
        %146 = sbr.rel (%p144) target = $region28
      $region27: #{outconv_forward.1} parent=23 // pred_region
        %s147 = smul.u32 32, %s17
        %p148 = scmp.lt.s32.totalorder %s16, 1
        %s149 = scalar_select %p148, %s16, 1
        %p150 = scmp.lt.s32.totalorder %s147, 31
        %s151 = scalar_select %p150, %s147, 31
        %s152 = smul.addr %s149, 32
        %s153 = sadd.s32 %s151, %s152
        %s154 = smul.addr %s153, 4
        %s155 = scalar_lea.vmem %s0, %s154
        %s156 = smul.u32 32, %s17
      $region28: #{outconv_forward.1} parent=23 // pred_fallthru
        _
    $region24: #{outconv_forward.1} parent=5 // pred_fallthru
      _
    %p157 = scmp.le.s32.totalorder 1, %s9
    %p158 = scmp.lt.s32.totalorder %s9, 3
    %p159 = pnand %p157, %p158
    %p160 = pneg %p159
    // Predicated region
    $region29: #{outconv_forward.1} parent=5 // pred_check
      _
    $region30: #{outconv_forward.1} parent=5 // pred_check_branch
      %162 = sbr.rel (%p159) target = $region32
    $region31: #{outconv_forward.1} parent=5 // pred_region
      %s163 = ssub.s32 %s9, 1
      %s164 = smul.u32 32, %s19
      %p165 = scmp.lt.s32.totalorder %s18, 1
      %s166 = scalar_select %p165, %s18, 1
      %p167 = scmp.lt.s32.totalorder %s164, 31
      %s168 = scalar_select %p167, %s164, 31
      %s169 = smul.addr %s166, 32
      %s170 = sadd.s32 %s168, %s169
      %s171 = smul.addr %s170, 4
      %s172 = scalar_lea.vmem %s0, %s171
      %p173 = pneg %p49
      %p174 = pneg %p46
      %p175 = pneg %p70
      %p176 = pneg %p67
      %p177 = pneg %p91
      %p178 = pneg %p88
      %p179 = pneg %p119
      %p180 = pneg %p116
      %s181 = smul.u32 32, %s19
      %p182 = scmp.lt.s32.totalorder %s18, 1
      %s183 = scalar_select %p182, %s18, 1
      %p184 = scmp.lt.s32.totalorder %s181, 31
      %s185 = scalar_select %p184, %s181, 31
      %s186 = smul.addr %s183, 32
      %s187 = sadd.s32 %s185, %s186
      %s188 = smul.addr %s187, 8
      %s189 = scalar_lea.vmem %s3, %s188
      %s190 = smul.u32 32, %s19
      %p191 = scmp.lt.s32.totalorder %s18, 1
      %s192 = scalar_select %p191, %s18, 1
      %p193 = scmp.lt.s32.totalorder %s190, 31
      %s194 = scalar_select %p193, %s190, 31
      %s195 = smul.addr %s192, 32
      %s196 = sadd.s32 %s194, %s195
      %s197 = smul.addr %s196, 4
      %s198 = scalar_lea.vmem %s0, %s197
      %s199 = smul.u32 32, %s19
      %s200 = smul.u32 32, %s19
      %p201 = scmp.lt.s32.totalorder %s18, 1
      %s202 = scalar_select %p201, %s18, 1
      %p203 = scmp.lt.s32.totalorder %s200, 31
      %s204 = scalar_select %p203, %s200, 31
      %s205 = smul.addr %s202, 32
      %s206 = sadd.s32 %s204, %s205
      %s207 = smul.addr %s206, 8
      %s208 = scalar_lea.vmem %s3, %s207
      %s209 = smul.u32 32, %s19
      %v210 = vld [vmem:[%s1] sm:$0xff]
      %v211 = vld [vmem:[%s198] sm:$0xff]
      %v212 = vld [vmem:[%s198 + $0x8] sm:$0xff]
      %v213 = vld [vmem:[%s198 + $0x10] sm:$0xff]
      %v214 = vld [vmem:[%s198 + $0x18] sm:$0xff]
      %v215 = vld [vmem:[%s198 + $0x20] sm:$0xff]
      %v216 = vld [vmem:[%s198 + $0x28] sm:$0xff]
      %v217 = vld [vmem:[%s198 + $0x30] sm:$0xff]
      %v218 = vld [vmem:[%s198 + $0x38] sm:$0xff]
      %v219 = vld [vmem:[%s198 + $0x40] sm:$0xff]
      %v220 = vld [vmem:[%s198 + $0x48] sm:$0xff]
      %v221 = vld [vmem:[%s198 + $0x50] sm:$0xff]
      %v222 = vld [vmem:[%s198 + $0x58] sm:$0xff]
      %v223 = vld [vmem:[%s198 + $0x60] sm:$0xff]
      %v224 = vld [vmem:[%s198 + $0x68] sm:$0xff]
      %v225 = vld [vmem:[%s198 + $0x70] sm:$0xff]
      %v226 = vld [vmem:[%s198 + $0x78] sm:$0xff]
      %v227 = vld [vmem:[%s2] sm:$0xff]
      %229 = vset.pattern.permute.xlu0 0
      %230 = vperm.xlu0 %229, %v227
      %v231 = vpop.permute.xlu0 %230
      %v249 = vcombine.high %v211, %v211
      %v250 = vcombine.high %v212, %v212
      %v251 = vcombine.high %v213, %v213
      %v252 = vcombine.high %v214, %v214
      %v253 = vcombine.high %v215, %v215
      %v254 = vcombine.high %v216, %v216
      %v255 = vcombine.high %v217, %v217
      %v256 = vcombine.high %v218, %v218
      %v257 = vcombine.high %v219, %v219
      %v258 = vcombine.high %v220, %v220
      %v259 = vcombine.high %v221, %v221
      %v260 = vcombine.high %v222, %v222
      %v261 = vcombine.high %v223, %v223
      %v262 = vcombine.high %v224, %v224
      %v263 = vcombine.high %v225, %v225
      %v264 = vcombine.high %v226, %v226
      %vm265 = vcmask 31744
      %v267 = vsel %vm265, %v210, 0
      %vm269 = vcmask 1043456
      %v270 = vsel %vm269, %v211, 0
      %v272 = vsel %vm269, %v249, 0
      %v274 = vsel %vm269, %v212, 0
      %v276 = vsel %vm269, %v250, 0
      %v278 = vsel %vm269, %v213, 0
      %v280 = vsel %vm269, %v251, 0
      %v282 = vsel %vm269, %v214, 0
      %v284 = vsel %vm269, %v252, 0
      %v286 = vsel %vm269, %v215, 0
      %v288 = vsel %vm269, %v253, 0
      %v290 = vsel %vm269, %v216, 0
      %v292 = vsel %vm269, %v254, 0
      %v294 = vsel %vm269, %v217, 0
      %v296 = vsel %vm269, %v255, 0
      %v298 = vsel %vm269, %v218, 0
      %v300 = vsel %vm269, %v256, 0
      %v302 = vsel %vm269, %v219, 0
      %v304 = vsel %vm269, %v257, 0
      %v306 = vsel %vm269, %v220, 0
      %v308 = vsel %vm269, %v258, 0
      %v310 = vsel %vm269, %v221, 0
      %v312 = vsel %vm269, %v259, 0
      %v314 = vsel %vm269, %v222, 0
      %v316 = vsel %vm269, %v260, 0
      %v318 = vsel %vm269, %v223, 0
      %v320 = vsel %vm269, %v261, 0
      %v322 = vsel %vm269, %v224, 0
      %v324 = vsel %vm269, %v262, 0
      %v326 = vsel %vm269, %v225, 0
      %v328 = vsel %vm269, %v263, 0
      %v330 = vsel %vm269, %v226, 0
      %v332 = vsel %vm269, %v264, 0
      %334 = vmatprep.subr.mxu0 %v272
      %335 = vmatpush1.msra.mxu0 %v270
      %336 = vmatprep.subr.mxu0 0.0
      %337 = vmatpush1.msra.mxu0 0.0
      %338 = vmatprep.subr.mxu0 0.0
      %339 = vmatpush1.msra.mxu0 0.0
      %340 = vmatprep.subr.mxu0 0.0
      %341 = vmatpush1.msra.mxu0 0.0
      %342 = vmatprep.subr.mxu0 0.0
      %343 = vmatpush1.msra.mxu0 0.0
      %344 = vmatprep.subr.mxu0 0.0
      %345 = vmatpush1.msra.mxu0 0.0
      %346 = vmatprep.subr.mxu0 0.0
      %347 = vmatpush1.msra.mxu0 0.0
      %348 = vmatprep.subr.mxu0 0.0
      %349 = vmatpush1.msra.mxu0 0.0
      %350 = vmatprep.subr.mxu0 0.0
      %351 = vmatpush1.msra.mxu0 0.0
      %352 = vmatprep.subr.mxu0 0.0
      %353 = vmatpush1.msra.mxu0 0.0
      %354 = vmatprep.subr.mxu0 0.0
      %355 = vmatpush1.msra.mxu0 0.0
      %356 = vmatprep.subr.mxu0 0.0
      %357 = vmatpush1.msra.mxu0 0.0
      %358 = vmatprep.subr.mxu0 0.0
      %359 = vmatpush1.msra.mxu0 0.0
      %360 = vmatprep.subr.mxu0 0.0
      %361 = vmatpush1.msra.mxu0 0.0
      %362 = vmatprep.subr.mxu0 0.0
      %363 = vmatpush1.msra.mxu0 0.0
      %364 = vmatprep.subr.mxu0 0.0
      %365 = vmatpush1.msra.mxu0 0.0
      %366 = vmatprep.subr.mxu0 0.0
      %367 = vmatpush1.msra.mxu0 0.0
      %368 = vmatprep.subr.mxu0 0.0
      %369 = vmatpush1.msra.mxu0 0.0
      %370 = vmatprep.subr.mxu0 0.0
      %371 = vmatpush1.msra.mxu0 0.0
      %372 = vmatprep.subr.mxu0 0.0
      %373 = vmatpush1.msra.mxu0 0.0
      %374 = vmatprep.subr.mxu0 0.0
      %375 = vmatpush1.msra.mxu0 0.0
      %376 = vmatprep.subr.mxu0 0.0
      %377 = vmatpush1.msra.mxu0 0.0
      %378 = vmatprep.subr.mxu0 0.0
      %379 = vmatpush1.msra.mxu0 0.0
      %380 = vmatprep.subr.mxu0 0.0
      %381 = vmatpush1.msra.mxu0 0.0
      %382 = vmatprep.subr.mxu0 0.0
      %383 = vmatpush1.msra.mxu0 0.0
      %384 = vmatprep.subr.mxu0 0.0
      %385 = vmatpush1.msra.mxu0 0.0
      %386 = vmatprep.subr.mxu0 0.0
      %387 = vmatpush1.msra.mxu0 0.0
      %388 = vmatprep.subr.mxu0 0.0
      %389 = vmatpush1.msra.mxu0 0.0
      %390 = vmatprep.subr.mxu0 0.0
      %391 = vmatpush1.msra.mxu0 0.0
      %392 = vmatprep.subr.mxu0 0.0
      %393 = vmatpush1.msra.mxu0 0.0
      %394 = vmatprep.subr.mxu0 0.0
      %395 = vmatpush1.msra.mxu0 0.0
      %396 = vmatprep.subr.mxu0 0.0
      %397 = vmatpush1.msra.mxu0 0.0
      %398 = vmatprep.mubr.f32.mxu0 0.0
      %399 = vmatmul.mubr.f32.gmra.mrb[0].mxu0 %v267
      %v400 = vpop.f32.mrb[0].mxu0
      %v401 = vadd.f32 %v231, %v400
      %v402 = vpop.f32.mrb[0].mxu0
      %v403 = vadd.f32 %v231, %v402
      %404 = vdwg.mxu0
      %405 = vmatprep.subr.mxu0 %v276
      %406 = vmatpush1.msra.mxu0 %v274
      %407 = vmatprep.subr.mxu0 0.0
      %408 = vmatpush1.msra.mxu0 0.0
      %409 = vmatprep.subr.mxu0 0.0
      %410 = vmatpush1.msra.mxu0 0.0
      %411 = vmatprep.subr.mxu0 0.0
      %412 = vmatpush1.msra.mxu0 0.0
      %413 = vmatprep.subr.mxu0 0.0
      %414 = vmatpush1.msra.mxu0 0.0
      %415 = vmatprep.subr.mxu0 0.0
      %416 = vmatpush1.msra.mxu0 0.0
      %417 = vmatprep.subr.mxu0 0.0
      %418 = vmatpush1.msra.mxu0 0.0
      %419 = vmatprep.subr.mxu0 0.0
      %420 = vmatpush1.msra.mxu0 0.0
      %421 = vmatprep.subr.mxu0 0.0
      %422 = vmatpush1.msra.mxu0 0.0
      %423 = vmatprep.subr.mxu0 0.0
      %424 = vmatpush1.msra.mxu0 0.0
      %425 = vmatprep.subr.mxu0 0.0
      %426 = vmatpush1.msra.mxu0 0.0
      %427 = vmatprep.subr.mxu0 0.0
      %428 = vmatpush1.msra.mxu0 0.0
      %429 = vmatprep.subr.mxu0 0.0
      %430 = vmatpush1.msra.mxu0 0.0
      %431 = vmatprep.subr.mxu0 0.0
      %432 = vmatpush1.msra.mxu0 0.0
      %433 = vmatprep.subr.mxu0 0.0
      %434 = vmatpush1.msra.mxu0 0.0
      %435 = vmatprep.subr.mxu0 0.0
      %436 = vmatpush1.msra.mxu0 0.0
      %437 = vmatprep.subr.mxu0 0.0
      %438 = vmatpush1.msra.mxu0 0.0
      %439 = vmatprep.subr.mxu0 0.0
      %440 = vmatpush1.msra.mxu0 0.0
      %441 = vmatprep.subr.mxu0 0.0
      %442 = vmatpush1.msra.mxu0 0.0
      %443 = vmatprep.subr.mxu0 0.0
      %444 = vmatpush1.msra.mxu0 0.0
      %445 = vmatprep.subr.mxu0 0.0
      %446 = vmatpush1.msra.mxu0 0.0
      %447 = vmatprep.subr.mxu0 0.0
      %448 = vmatpush1.msra.mxu0 0.0
      %449 = vmatprep.subr.mxu0 0.0
      %450 = vmatpush1.msra.mxu0 0.0
      %451 = vmatprep.subr.mxu0 0.0
      %452 = vmatpush1.msra.mxu0 0.0
      %453 = vmatprep.subr.mxu0 0.0
      %454 = vmatpush1.msra.mxu0 0.0
      %455 = vmatprep.subr.mxu0 0.0
      %456 = vmatpush1.msra.mxu0 0.0
      %457 = vmatprep.subr.mxu0 0.0
      %458 = vmatpush1.msra.mxu0 0.0
      %459 = vmatprep.subr.mxu0 0.0
      %460 = vmatpush1.msra.mxu0 0.0
      %461 = vmatprep.subr.mxu0 0.0
      %462 = vmatpush1.msra.mxu0 0.0
      %463 = vmatprep.subr.mxu0 0.0
      %464 = vmatpush1.msra.mxu0 0.0
      %465 = vmatprep.subr.mxu0 0.0
      %466 = vmatpush1.msra.mxu0 0.0
      %467 = vmatprep.subr.mxu0 0.0
      %468 = vmatpush1.msra.mxu0 0.0
      %469 = vmatprep.mubr.f32.mxu0 0.0
      %470 = vmatmul.mubr.f32.gmra.mrb[0].mxu0 %v267
      %v471 = vpop.f32.mrb[0].mxu0
      %v472 = vadd.f32 %v231, %v471
      %v473 = vpop.f32.mrb[0].mxu0
      %v474 = vadd.f32 %v231, %v473
      %475 = vdwg.mxu0
      %476 = vmatprep.subr.mxu0 %v280
      %477 = vmatpush1.msra.mxu0 %v278
      %478 = vmatprep.subr.mxu0 0.0
      %479 = vmatpush1.msra.mxu0 0.0
      %480 = vmatprep.subr.mxu0 0.0
      %481 = vmatpush1.msra.mxu0 0.0
      %482 = vmatprep.subr.mxu0 0.0
      %483 = vmatpush1.msra.mxu0 0.0
      %484 = vmatprep.subr.mxu0 0.0
      %485 = vmatpush1.msra.mxu0 0.0
      %486 = vmatprep.subr.mxu0 0.0
      %487 = vmatpush1.msra.mxu0 0.0
      %488 = vmatprep.subr.mxu0 0.0
      %489 = vmatpush1.msra.mxu0 0.0
      %490 = vmatprep.subr.mxu0 0.0
      %491 = vmatpush1.msra.mxu0 0.0
      %492 = vmatprep.subr.mxu0 0.0
      %493 = vmatpush1.msra.mxu0 0.0
      %494 = vmatprep.subr.mxu0 0.0
      %495 = vmatpush1.msra.mxu0 0.0
      %496 = vmatprep.subr.mxu0 0.0
      %497 = vmatpush1.msra.mxu0 0.0
      %498 = vmatprep.subr.mxu0 0.0
      %499 = vmatpush1.msra.mxu0 0.0
      %500 = vmatprep.subr.mxu0 0.0
      %501 = vmatpush1.msra.mxu0 0.0
      %502 = vmatprep.subr.mxu0 0.0
      %503 = vmatpush1.msra.mxu0 0.0
      %504 = vmatprep.subr.mxu0 0.0
      %505 = vmatpush1.msra.mxu0 0.0
      %506 = vmatprep.subr.mxu0 0.0
      %507 = vmatpush1.msra.mxu0 0.0
      %508 = vmatprep.subr.mxu0 0.0
      %509 = vmatpush1.msra.mxu0 0.0
      %510 = vmatprep.subr.mxu0 0.0
      %511 = vmatpush1.msra.mxu0 0.0
      %512 = vmatprep.subr.mxu0 0.0
      %513 = vmatpush1.msra.mxu0 0.0
      %514 = vmatprep.subr.mxu0 0.0
      %515 = vmatpush1.msra.mxu0 0.0
      %516 = vmatprep.subr.mxu0 0.0
      %517 = vmatpush1.msra.mxu0 0.0
      %518 = vmatprep.subr.mxu0 0.0
      %519 = vmatpush1.msra.mxu0 0.0
      %520 = vmatprep.subr.mxu0 0.0
      %521 = vmatpush1.msra.mxu0 0.0
      %522 = vmatprep.subr.mxu0 0.0
      %523 = vmatpush1.msra.mxu0 0.0
      %524 = vmatprep.subr.mxu0 0.0
      %525 = vmatpush1.msra.mxu0 0.0
      %526 = vmatprep.subr.mxu0 0.0
      %527 = vmatpush1.msra.mxu0 0.0
      %528 = vmatprep.subr.mxu0 0.0
      %529 = vmatpush1.msra.mxu0 0.0
      %530 = vmatprep.subr.mxu0 0.0
      %531 = vmatpush1.msra.mxu0 0.0
      %532 = vmatprep.subr.mxu0 0.0
      %533 = vmatpush1.msra.mxu0 0.0
      %534 = vmatprep.subr.mxu0 0.0
      %535 = vmatpush1.msra.mxu0 0.0
      %536 = vmatprep.subr.mxu0 0.0
      %537 = vmatpush1.msra.mxu0 0.0
      %538 = vmatprep.subr.mxu0 0.0
      %539 = vmatpush1.msra.mxu0 0.0
      %540 = vmatprep.mubr.f32.mxu0 0.0
      %541 = vmatmul.mubr.f32.gmra.mrb[0].mxu0 %v267
      %v542 = vpop.f32.mrb[0].mxu0
      %v543 = vadd.f32 %v231, %v542
      %v544 = vpop.f32.mrb[0].mxu0
      %v545 = vadd.f32 %v231, %v544
      %546 = vdwg.mxu0
      %547 = vmatprep.subr.mxu0 %v284
      %548 = vmatpush1.msra.mxu0 %v282
      %549 = vmatprep.subr.mxu0 0.0
      %550 = vmatpush1.msra.mxu0 0.0
      %551 = vmatprep.subr.mxu0 0.0
      %552 = vmatpush1.msra.mxu0 0.0
      %553 = vmatprep.subr.mxu0 0.0
      %554 = vmatpush1.msra.mxu0 0.0
      %555 = vmatprep.subr.mxu0 0.0
      %556 = vmatpush1.msra.mxu0 0.0
      %557 = vmatprep.subr.mxu0 0.0
      %558 = vmatpush1.msra.mxu0 0.0
      %559 = vmatprep.subr.mxu0 0.0
      %560 = vmatpush1.msra.mxu0 0.0
      %561 = vmatprep.subr.mxu0 0.0
      %562 = vmatpush1.msra.mxu0 0.0
      %563 = vmatprep.subr.mxu0 0.0
      %564 = vmatpush1.msra.mxu0 0.0
      %565 = vmatprep.subr.mxu0 0.0
      %566 = vmatpush1.msra.mxu0 0.0
      %567 = vmatprep.subr.mxu0 0.0
      %568 = vmatpush1.msra.mxu0 0.0
      %569 = vmatprep.subr.mxu0 0.0
      %570 = vmatpush1.msra.mxu0 0.0
      %571 = vmatprep.subr.mxu0 0.0
      %572 = vmatpush1.msra.mxu0 0.0
      %573 = vmatprep.subr.mxu0 0.0
      %574 = vmatpush1.msra.mxu0 0.0
      %575 = vmatprep.subr.mxu0 0.0
      %576 = vmatpush1.msra.mxu0 0.0
      %577 = vmatprep.subr.mxu0 0.0
      %578 = vmatpush1.msra.mxu0 0.0
      %579 = vmatprep.subr.mxu0 0.0
      %580 = vmatpush1.msra.mxu0 0.0
      %581 = vmatprep.subr.mxu0 0.0
      %582 = vmatpush1.msra.mxu0 0.0
      %583 = vmatprep.subr.mxu0 0.0
      %584 = vmatpush1.msra.mxu0 0.0
      %585 = vmatprep.subr.mxu0 0.0
      %586 = vmatpush1.msra.mxu0 0.0
      %587 = vmatprep.subr.mxu0 0.0
      %588 = vmatpush1.msra.mxu0 0.0
      %589 = vmatprep.subr.mxu0 0.0
      %590 = vmatpush1.msra.mxu0 0.0
      %591 = vmatprep.subr.mxu0 0.0
      %592 = vmatpush1.msra.mxu0 0.0
      %593 = vmatprep.subr.mxu0 0.0
      %594 = vmatpush1.msra.mxu0 0.0
      %595 = vmatprep.subr.mxu0 0.0
      %596 = vmatpush1.msra.mxu0 0.0
      %597 = vmatprep.subr.mxu0 0.0
      %598 = vmatpush1.msra.mxu0 0.0
      %599 = vmatprep.subr.mxu0 0.0
      %600 = vmatpush1.msra.mxu0 0.0
      %601 = vmatprep.subr.mxu0 0.0
      %602 = vmatpush1.msra.mxu0 0.0
      %603 = vmatprep.subr.mxu0 0.0
      %604 = vmatpush1.msra.mxu0 0.0
      %605 = vmatprep.subr.mxu0 0.0
      %606 = vmatpush1.msra.mxu0 0.0
      %607 = vmatprep.subr.mxu0 0.0
      %608 = vmatpush1.msra.mxu0 0.0
      %609 = vmatprep.subr.mxu0 0.0
      %610 = vmatpush1.msra.mxu0 0.0
      %611 = vmatprep.mubr.f32.mxu0 0.0
      %612 = vmatmul.mubr.f32.gmra.mrb[0].mxu0 %v267
      %v613 = vpop.f32.mrb[0].mxu0
      %v614 = vadd.f32 %v231, %v613
      %v615 = vpop.f32.mrb[0].mxu0
      %v616 = vadd.f32 %v231, %v615
      %617 = vdwg.mxu0
      %618 = vmatprep.subr.mxu0 %v288
      %619 = vmatpush1.msra.mxu0 %v286
      %620 = vmatprep.subr.mxu0 0.0
      %621 = vmatpush1.msra.mxu0 0.0
      %622 = vmatprep.subr.mxu0 0.0
      %623 = vmatpush1.msra.mxu0 0.0
      %624 = vmatprep.subr.mxu0 0.0
      %625 = vmatpush1.msra.mxu0 0.0
      %626 = vmatprep.subr.mxu0 0.0
      %627 = vmatpush1.msra.mxu0 0.0
      %628 = vmatprep.subr.mxu0 0.0
      %629 = vmatpush1.msra.mxu0 0.0
      %630 = vmatprep.subr.mxu0 0.0
      %631 = vmatpush1.msra.mxu0 0.0
      %632 = vmatprep.subr.mxu0 0.0
      %633 = vmatpush1.msra.mxu0 0.0
      %634 = vmatprep.subr.mxu0 0.0
      %635 = vmatpush1.msra.mxu0 0.0
      %636 = vmatprep.subr.mxu0 0.0
      %637 = vmatpush1.msra.mxu0 0.0
      %638 = vmatprep.subr.mxu0 0.0
      %639 = vmatpush1.msra.mxu0 0.0
      %640 = vmatprep.subr.mxu0 0.0
      %641 = vmatpush1.msra.mxu0 0.0
      %642 = vmatprep.subr.mxu0 0.0
      %643 = vmatpush1.msra.mxu0 0.0
      %644 = vmatprep.subr.mxu0 0.0
      %645 = vmatpush1.msra.mxu0 0.0
      %646 = vmatprep.subr.mxu0 0.0
      %647 = vmatpush1.msra.mxu0 0.0
      %648 = vmatprep.subr.mxu0 0.0
      %649 = vmatpush1.msra.mxu0 0.0
      %650 = vmatprep.subr.mxu0 0.0
      %651 = vmatpush1.msra.mxu0 0.0
      %652 = vmatprep.subr.mxu0 0.0
      %653 = vmatpush1.msra.mxu0 0.0
      %654 = vmatprep.subr.mxu0 0.0
      %655 = vmatpush1.msra.mxu0 0.0
      %656 = vmatprep.subr.mxu0 0.0
      %657 = vmatpush1.msra.mxu0 0.0
      %658 = vmatprep.subr.mxu0 0.0
      %659 = vmatpush1.msra.mxu0 0.0
      %660 = vmatprep.subr.mxu0 0.0
      %661 = vmatpush1.msra.mxu0 0.0
      %662 = vmatprep.subr.mxu0 0.0
      %663 = vmatpush1.msra.mxu0 0.0
      %664 = vmatprep.subr.mxu0 0.0
      %665 = vmatpush1.msra.mxu0 0.0
      %666 = vmatprep.subr.mxu0 0.0
      %667 = vmatpush1.msra.mxu0 0.0
      %668 = vmatprep.subr.mxu0 0.0
      %669 = vmatpush1.msra.mxu0 0.0
      %670 = vmatprep.subr.mxu0 0.0
      %671 = vmatpush1.msra.mxu0 0.0
      %672 = vmatprep.subr.mxu0 0.0
      %673 = vmatpush1.msra.mxu0 0.0
      %674 = vmatprep.subr.mxu0 0.0
      %675 = vmatpush1.msra.mxu0 0.0
      %676 = vmatprep.subr.mxu0 0.0
      %677 = vmatpush1.msra.mxu0 0.0
      %678 = vmatprep.subr.mxu0 0.0
      %679 = vmatpush1.msra.mxu0 0.0
      %680 = vmatprep.subr.mxu0 0.0
      %681 = vmatpush1.msra.mxu0 0.0
      %682 = vmatprep.mubr.f32.mxu0 0.0
      %683 = vmatmul.mubr.f32.gmra.mrb[0].mxu0 %v267
      %v684 = vpop.f32.mrb[0].mxu0
      %v685 = vadd.f32 %v231, %v684
      %v686 = vpop.f32.mrb[0].mxu0
      %v687 = vadd.f32 %v231, %v686
      %688 = vdwg.mxu0
      %689 = vmatprep.subr.mxu0 %v292
      %690 = vmatpush1.msra.mxu0 %v290
      %691 = vmatprep.subr.mxu0 0.0
      %692 = vmatpush1.msra.mxu0 0.0
      %693 = vmatprep.subr.mxu0 0.0
      %694 = vmatpush1.msra.mxu0 0.0
      %695 = vmatprep.subr.mxu0 0.0
      %696 = vmatpush1.msra.mxu0 0.0
      %697 = vmatprep.subr.mxu0 0.0
      %698 = vmatpush1.msra.mxu0 0.0
      %699 = vmatprep.subr.mxu0 0.0
      %700 = vmatpush1.msra.mxu0 0.0
      %701 = vmatprep.subr.mxu0 0.0
      %702 = vmatpush1.msra.mxu0 0.0
      %703 = vmatprep.subr.mxu0 0.0
      %704 = vmatpush1.msra.mxu0 0.0
      %705 = vmatprep.subr.mxu0 0.0
      %706 = vmatpush1.msra.mxu0 0.0
      %707 = vmatprep.subr.mxu0 0.0
      %708 = vmatpush1.msra.mxu0 0.0
      %709 = vmatprep.subr.mxu0 0.0
      %710 = vmatpush1.msra.mxu0 0.0
      %711 = vmatprep.subr.mxu0 0.0
      %712 = vmatpush1.msra.mxu0 0.0
      %713 = vmatprep.subr.mxu0 0.0
      %714 = vmatpush1.msra.mxu0 0.0
      %715 = vmatprep.subr.mxu0 0.0
      %716 = vmatpush1.msra.mxu0 0.0
      %717 = vmatprep.subr.mxu0 0.0
      %718 = vmatpush1.msra.mxu0 0.0
      %719 = vmatprep.subr.mxu0 0.0
      %720 = vmatpush1.msra.mxu0 0.0
      %721 = vmatprep.subr.mxu0 0.0
      %722 = vmatpush1.msra.mxu0 0.0
      %723 = vmatprep.subr.mxu0 0.0
      %724 = vmatpush1.msra.mxu0 0.0
      %725 = vmatprep.subr.mxu0 0.0
      %726 = vmatpush1.msra.mxu0 0.0
      %727 = vmatprep.subr.mxu0 0.0
      %728 = vmatpush1.msra.mxu0 0.0
      %729 = vmatprep.subr.mxu0 0.0
      %730 = vmatpush1.msra.mxu0 0.0
      %731 = vmatprep.subr.mxu0 0.0
      %732 = vmatpush1.msra.mxu0 0.0
      %733 = vmatprep.subr.mxu0 0.0
      %734 = vmatpush1.msra.mxu0 0.0
      %735 = vmatprep.subr.mxu0 0.0
      %736 = vmatpush1.msra.mxu0 0.0
      %737 = vmatprep.subr.mxu0 0.0
      %738 = vmatpush1.msra.mxu0 0.0
      %739 = vmatprep.subr.mxu0 0.0
      %740 = vmatpush1.msra.mxu0 0.0
      %741 = vmatprep.subr.mxu0 0.0
      %742 = vmatpush1.msra.mxu0 0.0
      %743 = vmatprep.subr.mxu0 0.0
      %744 = vmatpush1.msra.mxu0 0.0
      %745 = vmatprep.subr.mxu0 0.0
      %746 = vmatpush1.msra.mxu0 0.0
      %747 = vmatprep.subr.mxu0 0.0
      %748 = vmatpush1.msra.mxu0 0.0
      %749 = vmatprep.subr.mxu0 0.0
      %750 = vmatpush1.msra.mxu0 0.0
      %751 = vmatprep.subr.mxu0 0.0
      %752 = vmatpush1.msra.mxu0 0.0
      %753 = vmatprep.mubr.f32.mxu0 0.0
      %754 = vmatmul.mubr.f32.gmra.mrb[0].mxu0 %v267
      %v755 = vpop.f32.mrb[0].mxu0
      %v756 = vadd.f32 %v231, %v755
      %v757 = vpop.f32.mrb[0].mxu0
      %v758 = vadd.f32 %v231, %v757
      %759 = vdwg.mxu0
      %760 = vmatprep.subr.mxu0 %v296
      %761 = vmatpush1.msra.mxu0 %v294
      %762 = vmatprep.subr.mxu0 0.0
      %763 = vmatpush1.msra.mxu0 0.0
      %764 = vmatprep.subr.mxu0 0.0
      %765 = vmatpush1.msra.mxu0 0.0
      %766 = vmatprep.subr.mxu0 0.0
      %767 = vmatpush1.msra.mxu0 0.0
      %768 = vmatprep.subr.mxu0 0.0
      %769 = vmatpush1.msra.mxu0 0.0
      %770 = vmatprep.subr.mxu0 0.0
      %771 = vmatpush1.msra.mxu0 0.0
      %772 = vmatprep.subr.mxu0 0.0
      %773 = vmatpush1.msra.mxu0 0.0
      %774 = vmatprep.subr.mxu0 0.0
      %775 = vmatpush1.msra.mxu0 0.0
      %776 = vmatprep.subr.mxu0 0.0
      %777 = vmatpush1.msra.mxu0 0.0
      %778 = vmatprep.subr.mxu0 0.0
      %779 = vmatpush1.msra.mxu0 0.0
      %780 = vmatprep.subr.mxu0 0.0
      %781 = vmatpush1.msra.mxu0 0.0
      %782 = vmatprep.subr.mxu0 0.0
      %783 = vmatpush1.msra.mxu0 0.0
      %784 = vmatprep.subr.mxu0 0.0
      %785 = vmatpush1.msra.mxu0 0.0
      %786 = vmatprep.subr.mxu0 0.0
      %787 = vmatpush1.msra.mxu0 0.0
      %788 = vmatprep.subr.mxu0 0.0
      %789 = vmatpush1.msra.mxu0 0.0
      %790 = vmatprep.subr.mxu0 0.0
      %791 = vmatpush1.msra.mxu0 0.0
      %792 = vmatprep.subr.mxu0 0.0
      %793 = vmatpush1.msra.mxu0 0.0
      %794 = vmatprep.subr.mxu0 0.0
      %795 = vmatpush1.msra.mxu0 0.0
      %796 = vmatprep.subr.mxu0 0.0
      %797 = vmatpush1.msra.mxu0 0.0
      %798 = vmatprep.subr.mxu0 0.0
      %799 = vmatpush1.msra.mxu0 0.0
      %800 = vmatprep.subr.mxu0 0.0
      %801 = vmatpush1.msra.mxu0 0.0
      %802 = vmatprep.subr.mxu0 0.0
      %803 = vmatpush1.msra.mxu0 0.0
      %804 = vmatprep.subr.mxu0 0.0
      %805 = vmatpush1.msra.mxu0 0.0
      %806 = vmatprep.subr.mxu0 0.0
      %807 = vmatpush1.msra.mxu0 0.0
      %808 = vmatprep.subr.mxu0 0.0
      %809 = vmatpush1.msra.mxu0 0.0
      %810 = vmatprep.subr.mxu0 0.0
      %811 = vmatpush1.msra.mxu0 0.0
      %812 = vmatprep.subr.mxu0 0.0
      %813 = vmatpush1.msra.mxu0 0.0
      %814 = vmatprep.subr.mxu0 0.0
      %815 = vmatpush1.msra.mxu0 0.0
      %816 = vmatprep.subr.mxu0 0.0
      %817 = vmatpush1.msra.mxu0 0.0
      %818 = vmatprep.subr.mxu0 0.0
      %819 = vmatpush1.msra.mxu0 0.0
      %820 = vmatprep.subr.mxu0 0.0
      %821 = vmatpush1.msra.mxu0 0.0
      %822 = vmatprep.subr.mxu0 0.0
      %823 = vmatpush1.msra.mxu0 0.0
      %824 = vmatprep.mubr.f32.mxu0 0.0
      %825 = vmatmul.mubr.f32.gmra.mrb[0].mxu0 %v267
      %v826 = vpop.f32.mrb[0].mxu0
      %v827 = vadd.f32 %v231, %v826
      %v828 = vpop.f32.mrb[0].mxu0
      %v829 = vadd.f32 %v231, %v828
      %830 = vdwg.mxu0
      %831 = vmatprep.subr.mxu0 %v300
      %832 = vmatpush1.msra.mxu0 %v298
      %833 = vmatprep.subr.mxu0 0.0
      %834 = vmatpush1.msra.mxu0 0.0
      %835 = vmatprep.subr.mxu0 0.0
      %836 = vmatpush1.msra.mxu0 0.0
      %837 = vmatprep.subr.mxu0 0.0
      %838 = vmatpush1.msra.mxu0 0.0
      %839 = vmatprep.subr.mxu0 0.0
      %840 = vmatpush1.msra.mxu0 0.0
      %841 = vmatprep.subr.mxu0 0.0
      %842 = vmatpush1.msra.mxu0 0.0
      %843 = vmatprep.subr.mxu0 0.0
      %844 = vmatpush1.msra.mxu0 0.0
      %845 = vmatprep.subr.mxu0 0.0
      %846 = vmatpush1.msra.mxu0 0.0
      %847 = vmatprep.subr.mxu0 0.0
      %848 = vmatpush1.msra.mxu0 0.0
      %849 = vmatprep.subr.mxu0 0.0
      %850 = vmatpush1.msra.mxu0 0.0
      %851 = vmatprep.subr.mxu0 0.0
      %852 = vmatpush1.msra.mxu0 0.0
      %853 = vmatprep.subr.mxu0 0.0
      %854 = vmatpush1.msra.mxu0 0.0
      %855 = vmatprep.subr.mxu0 0.0
      %856 = vmatpush1.msra.mxu0 0.0
      %857 = vmatprep.subr.mxu0 0.0
      %858 = vmatpush1.msra.mxu0 0.0
      %859 = vmatprep.subr.mxu0 0.0
      %860 = vmatpush1.msra.mxu0 0.0
      %861 = vmatprep.subr.mxu0 0.0
      %862 = vmatpush1.msra.mxu0 0.0
      %863 = vmatprep.subr.mxu0 0.0
      %864 = vmatpush1.msra.mxu0 0.0
      %865 = vmatprep.subr.mxu0 0.0
      %866 = vmatpush1.msra.mxu0 0.0
      %867 = vmatprep.subr.mxu0 0.0
      %868 = vmatpush1.msra.mxu0 0.0
      %869 = vmatprep.subr.mxu0 0.0
      %870 = vmatpush1.msra.mxu0 0.0
      %871 = vmatprep.subr.mxu0 0.0
      %872 = vmatpush1.msra.mxu0 0.0
      %873 = vmatprep.subr.mxu0 0.0
      %874 = vmatpush1.msra.mxu0 0.0
      %875 = vmatprep.subr.mxu0 0.0
      %876 = vmatpush1.msra.mxu0 0.0
      %877 = vmatprep.subr.mxu0 0.0
      %878 = vmatpush1.msra.mxu0 0.0
      %879 = vmatprep.subr.mxu0 0.0
      %880 = vmatpush1.msra.mxu0 0.0
      %881 = vmatprep.subr.mxu0 0.0
      %882 = vmatpush1.msra.mxu0 0.0
      %883 = vmatprep.subr.mxu0 0.0
      %884 = vmatpush1.msra.mxu0 0.0
      %885 = vmatprep.subr.mxu0 0.0
      %886 = vmatpush1.msra.mxu0 0.0
      %887 = vmatprep.subr.mxu0 0.0
      %888 = vmatpush1.msra.mxu0 0.0
      %889 = vmatprep.subr.mxu0 0.0
      %890 = vmatpush1.msra.mxu0 0.0
      %891 = vmatprep.subr.mxu0 0.0
      %892 = vmatpush1.msra.mxu0 0.0
      %893 = vmatprep.subr.mxu0 0.0
      %894 = vmatpush1.msra.mxu0 0.0
      %895 = vmatprep.mubr.f32.mxu0 0.0
      %896 = vmatmul.mubr.f32.gmra.mrb[0].mxu0 %v267
      %v897 = vpop.f32.mrb[0].mxu0
      %v898 = vadd.f32 %v231, %v897
      %v899 = vpop.f32.mrb[0].mxu0
      %v900 = vadd.f32 %v231, %v899
      %901 = vdwg.mxu0
      %902 = vmatprep.subr.mxu0 %v304
      %903 = vmatpush1.msra.mxu0 %v302
      %904 = vmatprep.subr.mxu0 0.0
      %905 = vmatpush1.msra.mxu0 0.0
      %906 = vmatprep.subr.mxu0 0.0
      %907 = vmatpush1.msra.mxu0 0.0
      %908 = vmatprep.subr.mxu0 0.0
      %909 = vmatpush1.msra.mxu0 0.0
      %910 = vmatprep.subr.mxu0 0.0
      %911 = vmatpush1.msra.mxu0 0.0
      %912 = vmatprep.subr.mxu0 0.0
      %913 = vmatpush1.msra.mxu0 0.0
      %914 = vmatprep.subr.mxu0 0.0
      %915 = vmatpush1.msra.mxu0 0.0
      %916 = vmatprep.subr.mxu0 0.0
      %917 = vmatpush1.msra.mxu0 0.0
      %918 = vmatprep.subr.mxu0 0.0
      %919 = vmatpush1.msra.mxu0 0.0
      %920 = vmatprep.subr.mxu0 0.0
      %921 = vmatpush1.msra.mxu0 0.0
      %922 = vmatprep.subr.mxu0 0.0
      %923 = vmatpush1.msra.mxu0 0.0
      %924 = vmatprep.subr.mxu0 0.0
      %925 = vmatpush1.msra.mxu0 0.0
      %926 = vmatprep.subr.mxu0 0.0
      %927 = vmatpush1.msra.mxu0 0.0
      %928 = vmatprep.subr.mxu0 0.0
      %929 = vmatpush1.msra.mxu0 0.0
      %930 = vmatprep.subr.mxu0 0.0
      %931 = vmatpush1.msra.mxu0 0.0
      %932 = vmatprep.subr.mxu0 0.0
      %933 = vmatpush1.msra.mxu0 0.0
      %934 = vmatprep.subr.mxu0 0.0
      %935 = vmatpush1.msra.mxu0 0.0
      %936 = vmatprep.subr.mxu0 0.0
      %937 = vmatpush1.msra.mxu0 0.0
      %938 = vmatprep.subr.mxu0 0.0
      %939 = vmatpush1.msra.mxu0 0.0
      %940 = vmatprep.subr.mxu0 0.0
      %941 = vmatpush1.msra.mxu0 0.0
      %942 = vmatprep.subr.mxu0 0.0
      %943 = vmatpush1.msra.mxu0 0.0
      %944 = vmatprep.subr.mxu0 0.0
      %945 = vmatpush1.msra.mxu0 0.0
      %946 = vmatprep.subr.mxu0 0.0
      %947 = vmatpush1.msra.mxu0 0.0
      %948 = vmatprep.subr.mxu0 0.0
      %949 = vmatpush1.msra.mxu0 0.0
      %950 = vmatprep.subr.mxu0 0.0
      %951 = vmatpush1.msra.mxu0 0.0
      %952 = vmatprep.subr.mxu0 0.0
      %953 = vmatpush1.msra.mxu0 0.0
      %954 = vmatprep.subr.mxu0 0.0
      %955 = vmatpush1.msra.mxu0 0.0
      %956 = vmatprep.subr.mxu0 0.0
      %957 = vmatpush1.msra.mxu0 0.0
      %958 = vmatprep.subr.mxu0 0.0
      %959 = vmatpush1.msra.mxu0 0.0
      %960 = vmatprep.subr.mxu0 0.0
      %961 = vmatpush1.msra.mxu0 0.0
      %962 = vmatprep.subr.mxu0 0.0
      %963 = vmatpush1.msra.mxu0 0.0
      %964 = vmatprep.subr.mxu0 0.0
      %965 = vmatpush1.msra.mxu0 0.0
      %966 = vmatprep.mubr.f32.mxu0 0.0
      %967 = vmatmul.mubr.f32.gmra.mrb[0].mxu0 %v267
      %v968 = vpop.f32.mrb[0].mxu0
      %v969 = vadd.f32 %v231, %v968
      %v970 = vpop.f32.mrb[0].mxu0
      %v971 = vadd.f32 %v231, %v970
      %972 = vdwg.mxu0
      %973 = vmatprep.subr.mxu0 %v308
      %974 = vmatpush1.msra.mxu0 %v306
      %975 = vmatprep.subr.mxu0 0.0
      %976 = vmatpush1.msra.mxu0 0.0
      %977 = vmatprep.subr.mxu0 0.0
      %978 = vmatpush1.msra.mxu0 0.0
      %979 = vmatprep.subr.mxu0 0.0
      %980 = vmatpush1.msra.mxu0 0.0
      %981 = vmatprep.subr.mxu0 0.0
      %982 = vmatpush1.msra.mxu0 0.0
      %983 = vmatprep.subr.mxu0 0.0
      %984 = vmatpush1.msra.mxu0 0.0
      %985 = vmatprep.subr.mxu0 0.0
      %986 = vmatpush1.msra.mxu0 0.0
      %987 = vmatprep.subr.mxu0 0.0
      %988 = vmatpush1.msra.mxu0 0.0
      %989 = vmatprep.subr.mxu0 0.0
      %990 = vmatpush1.msra.mxu0 0.0
      %991 = vmatprep.subr.mxu0 0.0
      %992 = vmatpush1.msra.mxu0 0.0
      %993 = vmatprep.subr.mxu0 0.0
      %994 = vmatpush1.msra.mxu0 0.0
      %995 = vmatprep.subr.mxu0 0.0
      %996 = vmatpush1.msra.mxu0 0.0
      %997 = vmatprep.subr.mxu0 0.0
      %998 = vmatpush1.msra.mxu0 0.0
      %999 = vmatprep.subr.mxu0 0.0
      %1000 = vmatpush1.msra.mxu0 0.0
      %1001 = vmatprep.subr.mxu0 0.0
      %1002 = vmatpush1.msra.mxu0 0.0
      %1003 = vmatprep.subr.mxu0 0.0
      %1004 = vmatpush1.msra.mxu0 0.0
      %1005 = vmatprep.subr.mxu0 0.0
      %1006 = vmatpush1.msra.mxu0 0.0
      %1007 = vmatprep.subr.mxu0 0.0
      %1008 = vmatpush1.msra.mxu0 0.0
      %1009 = vmatprep.subr.mxu0 0.0
      %1010 = vmatpush1.msra.mxu0 0.0
      %1011 = vmatprep.subr.mxu0 0.0
      %1012 = vmatpush1.msra.mxu0 0.0
      %1013 = vmatprep.subr.mxu0 0.0
      %1014 = vmatpush1.msra.mxu0 0.0
      %1015 = vmatprep.subr.mxu0 0.0
      %1016 = vmatpush1.msra.mxu0 0.0
      %1017 = vmatprep.subr.mxu0 0.0
      %1018 = vmatpush1.msra.mxu0 0.0
      %1019 = vmatprep.subr.mxu0 0.0
      %1020 = vmatpush1.msra.mxu0 0.0
      %1021 = vmatprep.subr.mxu0 0.0
      %1022 = vmatpush1.msra.mxu0 0.0
      %1023 = vmatprep.subr.mxu0 0.0
      %1024 = vmatpush1.msra.mxu0 0.0
      %1025 = vmatprep.subr.mxu0 0.0
      %1026 = vmatpush1.msra.mxu0 0.0
      %1027 = vmatprep.subr.mxu0 0.0
      %1028 = vmatpush1.msra.mxu0 0.0
      %1029 = vmatprep.subr.mxu0 0.0
      %1030 = vmatpush1.msra.mxu0 0.0
      %1031 = vmatprep.subr.mxu0 0.0
      %1032 = vmatpush1.msra.mxu0 0.0
      %1033 = vmatprep.subr.mxu0 0.0
      %1034 = vmatpush1.msra.mxu0 0.0
      %1035 = vmatprep.subr.mxu0 0.0
      %1036 = vmatpush1.msra.mxu0 0.0
      %1037 = vmatprep.mubr.f32.mxu0 0.0
      %1038 = vmatmul.mubr.f32.gmra.mrb[0].mxu0 %v267
      %v1039 = vpop.f32.mrb[0].mxu0
      %v1040 = vadd.f32 %v231, %v1039
      %v1041 = vpop.f32.mrb[0].mxu0
      %v1042 = vadd.f32 %v231, %v1041
      %1043 = vdwg.mxu0
      %1044 = vmatprep.subr.mxu0 %v312
      %1045 = vmatpush1.msra.mxu0 %v310
      %1046 = vmatprep.subr.mxu0 0.0
      %1047 = vmatpush1.msra.mxu0 0.0
      %1048 = vmatprep.subr.mxu0 0.0
      %1049 = vmatpush1.msra.mxu0 0.0
      %1050 = vmatprep.subr.mxu0 0.0
      %1051 = vmatpush1.msra.mxu0 0.0
      %1052 = vmatprep.subr.mxu0 0.0
      %1053 = vmatpush1.msra.mxu0 0.0
      %1054 = vmatprep.subr.mxu0 0.0
      %1055 = vmatpush1.msra.mxu0 0.0
      %1056 = vmatprep.subr.mxu0 0.0
      %1057 = vmatpush1.msra.mxu0 0.0
      %1058 = vmatprep.subr.mxu0 0.0
      %1059 = vmatpush1.msra.mxu0 0.0
      %1060 = vmatprep.subr.mxu0 0.0
      %1061 = vmatpush1.msra.mxu0 0.0
      %1062 = vmatprep.subr.mxu0 0.0
      %1063 = vmatpush1.msra.mxu0 0.0
      %1064 = vmatprep.subr.mxu0 0.0
      %1065 = vmatpush1.msra.mxu0 0.0
      %1066 = vmatprep.subr.mxu0 0.0
      %1067 = vmatpush1.msra.mxu0 0.0
      %1068 = vmatprep.subr.mxu0 0.0
      %1069 = vmatpush1.msra.mxu0 0.0
      %1070 = vmatprep.subr.mxu0 0.0
      %1071 = vmatpush1.msra.mxu0 0.0
      %1072 = vmatprep.subr.mxu0 0.0
      %1073 = vmatpush1.msra.mxu0 0.0
      %1074 = vmatprep.subr.mxu0 0.0
      %1075 = vmatpush1.msra.mxu0 0.0
      %1076 = vmatprep.subr.mxu0 0.0
      %1077 = vmatpush1.msra.mxu0 0.0
      %1078 = vmatprep.subr.mxu0 0.0
      %1079 = vmatpush1.msra.mxu0 0.0
      %1080 = vmatprep.subr.mxu0 0.0
      %1081 = vmatpush1.msra.mxu0 0.0
      %1082 = vmatprep.subr.mxu0 0.0
      %1083 = vmatpush1.msra.mxu0 0.0
      %1084 = vmatprep.subr.mxu0 0.0
      %1085 = vmatpush1.msra.mxu0 0.0
      %1086 = vmatprep.subr.mxu0 0.0
      %1087 = vmatpush1.msra.mxu0 0.0
      %1088 = vmatprep.subr.mxu0 0.0
      %1089 = vmatpush1.msra.mxu0 0.0
      %1090 = vmatprep.subr.mxu0 0.0
      %1091 = vmatpush1.msra.mxu0 0.0
      %1092 = vmatprep.subr.mxu0 0.0
      %1093 = vmatpush1.msra.mxu0 0.0
      %1094 = vmatprep.subr.mxu0 0.0
      %1095 = vmatpush1.msra.mxu0 0.0
      %1096 = vmatprep.subr.mxu0 0.0
      %1097 = vmatpush1.msra.mxu0 0.0
      %1098 = vmatprep.subr.mxu0 0.0
      %1099 = vmatpush1.msra.mxu0 0.0
      %1100 = vmatprep.subr.mxu0 0.0
      %1101 = vmatpush1.msra.mxu0 0.0
      %1102 = vmatprep.subr.mxu0 0.0
      %1103 = vmatpush1.msra.mxu0 0.0
      %1104 = vmatprep.subr.mxu0 0.0
      %1105 = vmatpush1.msra.mxu0 0.0
      %1106 = vmatprep.subr.mxu0 0.0
      %1107 = vmatpush1.msra.mxu0 0.0
      %1108 = vmatprep.mubr.f32.mxu0 0.0
      %1109 = vmatmul.mubr.f32.gmra.mrb[0].mxu0 %v267
      %v1110 = vpop.f32.mrb[0].mxu0
      %v1111 = vadd.f32 %v231, %v1110
      %v1112 = vpop.f32.mrb[0].mxu0
      %v1113 = vadd.f32 %v231, %v1112
      %1114 = vdwg.mxu0
      %1115 = vmatprep.subr.mxu0 %v316
      %1116 = vmatpush1.msra.mxu0 %v314
      %1117 = vmatprep.subr.mxu0 0.0
      %1118 = vmatpush1.msra.mxu0 0.0
      %1119 = vmatprep.subr.mxu0 0.0
      %1120 = vmatpush1.msra.mxu0 0.0
      %1121 = vmatprep.subr.mxu0 0.0
      %1122 = vmatpush1.msra.mxu0 0.0
      %1123 = vmatprep.subr.mxu0 0.0
      %1124 = vmatpush1.msra.mxu0 0.0
      %1125 = vmatprep.subr.mxu0 0.0
      %1126 = vmatpush1.msra.mxu0 0.0
      %1127 = vmatprep.subr.mxu0 0.0
      %1128 = vmatpush1.msra.mxu0 0.0
      %1129 = vmatprep.subr.mxu0 0.0
      %1130 = vmatpush1.msra.mxu0 0.0
      %1131 = vmatprep.subr.mxu0 0.0
      %1132 = vmatpush1.msra.mxu0 0.0
      %1133 = vmatprep.subr.mxu0 0.0
      %1134 = vmatpush1.msra.mxu0 0.0
      %1135 = vmatprep.subr.mxu0 0.0
      %1136 = vmatpush1.msra.mxu0 0.0
      %1137 = vmatprep.subr.mxu0 0.0
      %1138 = vmatpush1.msra.mxu0 0.0
      %1139 = vmatprep.subr.mxu0 0.0
      %1140 = vmatpush1.msra.mxu0 0.0
      %1141 = vmatprep.subr.mxu0 0.0
      %1142 = vmatpush1.msra.mxu0 0.0
      %1143 = vmatprep.subr.mxu0 0.0
      %1144 = vmatpush1.msra.mxu0 0.0
      %1145 = vmatprep.subr.mxu0 0.0
      %1146 = vmatpush1.msra.mxu0 0.0
      %1147 = vmatprep.subr.mxu0 0.0
      %1148 = vmatpush1.msra.mxu0 0.0
      %1149 = vmatprep.subr.mxu0 0.0
      %1150 = vmatpush1.msra.mxu0 0.0
      %1151 = vmatprep.subr.mxu0 0.0
      %1152 = vmatpush1.msra.mxu0 0.0
      %1153 = vmatprep.subr.mxu0 0.0
      %1154 = vmatpush1.msra.mxu0 0.0
      %1155 = vmatprep.subr.mxu0 0.0
      %1156 = vmatpush1.msra.mxu0 0.0
      %1157 = vmatprep.subr.mxu0 0.0
      %1158 = vmatpush1.msra.mxu0 0.0
      %1159 = vmatprep.subr.mxu0 0.0
      %1160 = vmatpush1.msra.mxu0 0.0
      %1161 = vmatprep.subr.mxu0 0.0
      %1162 = vmatpush1.msra.mxu0 0.0
      %1163 = vmatprep.subr.mxu0 0.0
      %1164 = vmatpush1.msra.mxu0 0.0
      %1165 = vmatprep.subr.mxu0 0.0
      %1166 = vmatpush1.msra.mxu0 0.0
      %1167 = vmatprep.subr.mxu0 0.0
      %1168 = vmatpush1.msra.mxu0 0.0
      %1169 = vmatprep.subr.mxu0 0.0
      %1170 = vmatpush1.msra.mxu0 0.0
      %1171 = vmatprep.subr.mxu0 0.0
      %1172 = vmatpush1.msra.mxu0 0.0
      %1173 = vmatprep.subr.mxu0 0.0
      %1174 = vmatpush1.msra.mxu0 0.0
      %1175 = vmatprep.subr.mxu0 0.0
      %1176 = vmatpush1.msra.mxu0 0.0
      %1177 = vmatprep.subr.mxu0 0.0
      %1178 = vmatpush1.msra.mxu0 0.0
      %1179 = vmatprep.mubr.f32.mxu0 0.0
      %1180 = vmatmul.mubr.f32.gmra.mrb[0].mxu0 %v267
      %v1181 = vpop.f32.mrb[0].mxu0
      %v1182 = vadd.f32 %v231, %v1181
      %v1183 = vpop.f32.mrb[0].mxu0
      %v1184 = vadd.f32 %v231, %v1183
      %1185 = vdwg.mxu0
      %1186 = vmatprep.subr.mxu0 %v320
      %1187 = vmatpush1.msra.mxu0 %v318
      %1188 = vmatprep.subr.mxu0 0.0
      %1189 = vmatpush1.msra.mxu0 0.0
      %1190 = vmatprep.subr.mxu0 0.0
      %1191 = vmatpush1.msra.mxu0 0.0
      %1192 = vmatprep.subr.mxu0 0.0
      %1193 = vmatpush1.msra.mxu0 0.0
      %1194 = vmatprep.subr.mxu0 0.0
      %1195 = vmatpush1.msra.mxu0 0.0
      %1196 = vmatprep.subr.mxu0 0.0
      %1197 = vmatpush1.msra.mxu0 0.0
      %1198 = vmatprep.subr.mxu0 0.0
      %1199 = vmatpush1.msra.mxu0 0.0
      %1200 = vmatprep.subr.mxu0 0.0
      %1201 = vmatpush1.msra.mxu0 0.0
      %1202 = vmatprep.subr.mxu0 0.0
      %1203 = vmatpush1.msra.mxu0 0.0
      %1204 = vmatprep.subr.mxu0 0.0
      %1205 = vmatpush1.msra.mxu0 0.0
      %1206 = vmatprep.subr.mxu0 0.0
      %1207 = vmatpush1.msra.mxu0 0.0
      %1208 = vmatprep.subr.mxu0 0.0
      %1209 = vmatpush1.msra.mxu0 0.0
      %1210 = vmatprep.subr.mxu0 0.0
      %1211 = vmatpush1.msra.mxu0 0.0
      %1212 = vmatprep.subr.mxu0 0.0
      %1213 = vmatpush1.msra.mxu0 0.0
      %1214 = vmatprep.subr.mxu0 0.0
      %1215 = vmatpush1.msra.mxu0 0.0
      %1216 = vmatprep.subr.mxu0 0.0
      %1217 = vmatpush1.msra.mxu0 0.0
      %1218 = vmatprep.subr.mxu0 0.0
      %1219 = vmatpush1.msra.mxu0 0.0
      %1220 = vmatprep.subr.mxu0 0.0
      %1221 = vmatpush1.msra.mxu0 0.0
      %1222 = vmatprep.subr.mxu0 0.0
      %1223 = vmatpush1.msra.mxu0 0.0
      %1224 = vmatprep.subr.mxu0 0.0
      %1225 = vmatpush1.msra.mxu0 0.0
      %1226 = vmatprep.subr.mxu0 0.0
      %1227 = vmatpush1.msra.mxu0 0.0
      %1228 = vmatprep.subr.mxu0 0.0
      %1229 = vmatpush1.msra.mxu0 0.0
      %1230 = vmatprep.subr.mxu0 0.0
      %1231 = vmatpush1.msra.mxu0 0.0
      %1232 = vmatprep.subr.mxu0 0.0
      %1233 = vmatpush1.msra.mxu0 0.0
      %1234 = vmatprep.subr.mxu0 0.0
      %1235 = vmatpush1.msra.mxu0 0.0
      %1236 = vmatprep.subr.mxu0 0.0
      %1237 = vmatpush1.msra.mxu0 0.0
      %1238 = vmatprep.subr.mxu0 0.0
      %1239 = vmatpush1.msra.mxu0 0.0
      %1240 = vmatprep.subr.mxu0 0.0
      %1241 = vmatpush1.msra.mxu0 0.0
      %1242 = vmatprep.subr.mxu0 0.0
      %1243 = vmatpush1.msra.mxu0 0.0
      %1244 = vmatprep.subr.mxu0 0.0
      %1245 = vmatpush1.msra.mxu0 0.0
      %1246 = vmatprep.subr.mxu0 0.0
      %1247 = vmatpush1.msra.mxu0 0.0
      %1248 = vmatprep.subr.mxu0 0.0
      %1249 = vmatpush1.msra.mxu0 0.0
      %1250 = vmatprep.mubr.f32.mxu0 0.0
      %1251 = vmatmul.mubr.f32.gmra.mrb[0].mxu0 %v267
      %v1252 = vpop.f32.mrb[0].mxu0
      %v1253 = vadd.f32 %v231, %v1252
      %v1254 = vpop.f32.mrb[0].mxu0
      %v1255 = vadd.f32 %v231, %v1254
      %1256 = vdwg.mxu0
      %1257 = vmatprep.subr.mxu0 %v324
      %1258 = vmatpush1.msra.mxu0 %v322
      %1259 = vmatprep.subr.mxu0 0.0
      %1260 = vmatpush1.msra.mxu0 0.0
      %1261 = vmatprep.subr.mxu0 0.0
      %1262 = vmatpush1.msra.mxu0 0.0
      %1263 = vmatprep.subr.mxu0 0.0
      %1264 = vmatpush1.msra.mxu0 0.0
      %1265 = vmatprep.subr.mxu0 0.0
      %1266 = vmatpush1.msra.mxu0 0.0
      %1267 = vmatprep.subr.mxu0 0.0
      %1268 = vmatpush1.msra.mxu0 0.0
      %1269 = vmatprep.subr.mxu0 0.0
      %1270 = vmatpush1.msra.mxu0 0.0
      %1271 = vmatprep.subr.mxu0 0.0
      %1272 = vmatpush1.msra.mxu0 0.0
      %1273 = vmatprep.subr.mxu0 0.0
      %1274 = vmatpush1.msra.mxu0 0.0
      %1275 = vmatprep.subr.mxu0 0.0
      %1276 = vmatpush1.msra.mxu0 0.0
      %1277 = vmatprep.subr.mxu0 0.0
      %1278 = vmatpush1.msra.mxu0 0.0
      %1279 = vmatprep.subr.mxu0 0.0
      %1280 = vmatpush1.msra.mxu0 0.0
      %1281 = vmatprep.subr.mxu0 0.0
      %1282 = vmatpush1.msra.mxu0 0.0
      %1283 = vmatprep.subr.mxu0 0.0
      %1284 = vmatpush1.msra.mxu0 0.0
      %1285 = vmatprep.subr.mxu0 0.0
      %1286 = vmatpush1.msra.mxu0 0.0
      %1287 = vmatprep.subr.mxu0 0.0
      %1288 = vmatpush1.msra.mxu0 0.0
      %1289 = vmatprep.subr.mxu0 0.0
      %1290 = vmatpush1.msra.mxu0 0.0
      %1291 = vmatprep.subr.mxu0 0.0
      %1292 = vmatpush1.msra.mxu0 0.0
      %1293 = vmatprep.subr.mxu0 0.0
      %1294 = vmatpush1.msra.mxu0 0.0
      %1295 = vmatprep.subr.mxu0 0.0
      %1296 = vmatpush1.msra.mxu0 0.0
      %1297 = vmatprep.subr.mxu0 0.0
      %1298 = vmatpush1.msra.mxu0 0.0
      %1299 = vmatprep.subr.mxu0 0.0
      %1300 = vmatpush1.msra.mxu0 0.0
      %1301 = vmatprep.subr.mxu0 0.0
      %1302 = vmatpush1.msra.mxu0 0.0
      %1303 = vmatprep.subr.mxu0 0.0
      %1304 = vmatpush1.msra.mxu0 0.0
      %1305 = vmatprep.subr.mxu0 0.0
      %1306 = vmatpush1.msra.mxu0 0.0
      %1307 = vmatprep.subr.mxu0 0.0
      %1308 = vmatpush1.msra.mxu0 0.0
      %1309 = vmatprep.subr.mxu0 0.0
      %1310 = vmatpush1.msra.mxu0 0.0
      %1311 = vmatprep.subr.mxu0 0.0
      %1312 = vmatpush1.msra.mxu0 0.0
      %1313 = vmatprep.subr.mxu0 0.0
      %1314 = vmatpush1.msra.mxu0 0.0
      %1315 = vmatprep.subr.mxu0 0.0
      %1316 = vmatpush1.msra.mxu0 0.0
      %1317 = vmatprep.subr.mxu0 0.0
      %1318 = vmatpush1.msra.mxu0 0.0
      %1319 = vmatprep.subr.mxu0 0.0
      %1320 = vmatpush1.msra.mxu0 0.0
      %1321 = vmatprep.mubr.f32.mxu0 0.0
      %1322 = vmatmul.mubr.f32.gmra.mrb[0].mxu0 %v267
      %v1323 = vpop.f32.mrb[0].mxu0
      %v1324 = vadd.f32 %v231, %v1323
      %v1325 = vpop.f32.mrb[0].mxu0
      %v1326 = vadd.f32 %v231, %v1325
      %1327 = vdwg.mxu0
      %1328 = vmatprep.subr.mxu0 %v328
      %1329 = vmatpush1.msra.mxu0 %v326
      %1330 = vmatprep.subr.mxu0 0.0
      %1331 = vmatpush1.msra.mxu0 0.0
      %1332 = vmatprep.subr.mxu0 0.0
      %1333 = vmatpush1.msra.mxu0 0.0
      %1334 = vmatprep.subr.mxu0 0.0
      %1335 = vmatpush1.msra.mxu0 0.0
      %1336 = vmatprep.subr.mxu0 0.0
      %1337 = vmatpush1.msra.mxu0 0.0
      %1338 = vmatprep.subr.mxu0 0.0
      %1339 = vmatpush1.msra.mxu0 0.0
      %1340 = vmatprep.subr.mxu0 0.0
      %1341 = vmatpush1.msra.mxu0 0.0
      %1342 = vmatprep.subr.mxu0 0.0
      %1343 = vmatpush1.msra.mxu0 0.0
      %1344 = vmatprep.subr.mxu0 0.0
      %1345 = vmatpush1.msra.mxu0 0.0
      %1346 = vmatprep.subr.mxu0 0.0
      %1347 = vmatpush1.msra.mxu0 0.0
      %1348 = vmatprep.subr.mxu0 0.0
      %1349 = vmatpush1.msra.mxu0 0.0
      %1350 = vmatprep.subr.mxu0 0.0
      %1351 = vmatpush1.msra.mxu0 0.0
      %1352 = vmatprep.subr.mxu0 0.0
      %1353 = vmatpush1.msra.mxu0 0.0
      %1354 = vmatprep.subr.mxu0 0.0
      %1355 = vmatpush1.msra.mxu0 0.0
      %1356 = vmatprep.subr.mxu0 0.0
      %1357 = vmatpush1.msra.mxu0 0.0
      %1358 = vmatprep.subr.mxu0 0.0
      %1359 = vmatpush1.msra.mxu0 0.0
      %1360 = vmatprep.subr.mxu0 0.0
      %1361 = vmatpush1.msra.mxu0 0.0
      %1362 = vmatprep.subr.mxu0 0.0
      %1363 = vmatpush1.msra.mxu0 0.0
      %1364 = vmatprep.subr.mxu0 0.0
      %1365 = vmatpush1.msra.mxu0 0.0
      %1366 = vmatprep.subr.mxu0 0.0
      %1367 = vmatpush1.msra.mxu0 0.0
      %1368 = vmatprep.subr.mxu0 0.0
      %1369 = vmatpush1.msra.mxu0 0.0
      %1370 = vmatprep.subr.mxu0 0.0
      %1371 = vmatpush1.msra.mxu0 0.0
      %1372 = vmatprep.subr.mxu0 0.0
      %1373 = vmatpush1.msra.mxu0 0.0
      %1374 = vmatprep.subr.mxu0 0.0
      %1375 = vmatpush1.msra.mxu0 0.0
      %1376 = vmatprep.subr.mxu0 0.0
      %1377 = vmatpush1.msra.mxu0 0.0
      %1378 = vmatprep.subr.mxu0 0.0
      %1379 = vmatpush1.msra.mxu0 0.0
      %1380 = vmatprep.subr.mxu0 0.0
      %1381 = vmatpush1.msra.mxu0 0.0
      %1382 = vmatprep.subr.mxu0 0.0
      %1383 = vmatpush1.msra.mxu0 0.0
      %1384 = vmatprep.subr.mxu0 0.0
      %1385 = vmatpush1.msra.mxu0 0.0
      %1386 = vmatprep.subr.mxu0 0.0
      %1387 = vmatpush1.msra.mxu0 0.0
      %1388 = vmatprep.subr.mxu0 0.0
      %1389 = vmatpush1.msra.mxu0 0.0
      %1390 = vmatprep.subr.mxu0 0.0
      %1391 = vmatpush1.msra.mxu0 0.0
      %1392 = vmatprep.mubr.f32.mxu0 0.0
      %1393 = vmatmul.mubr.f32.gmra.mrb[0].mxu0 %v267
      %v1394 = vpop.f32.mrb[0].mxu0
      %v1395 = vadd.f32 %v231, %v1394
      %v1396 = vpop.f32.mrb[0].mxu0
      %v1397 = vadd.f32 %v231, %v1396
      %1398 = vdwg.mxu0
      %1399 = vmatprep.subr.mxu0 %v332
      %1400 = vmatpush1.msra.mxu0 %v330
      %1401 = vmatprep.subr.mxu0 0.0
      %1402 = vmatpush1.msra.mxu0 0.0
      %1403 = vmatprep.subr.mxu0 0.0
      %1404 = vmatpush1.msra.mxu0 0.0
      %1405 = vmatprep.subr.mxu0 0.0
      %1406 = vmatpush1.msra.mxu0 0.0
      %1407 = vmatprep.subr.mxu0 0.0
      %1408 = vmatpush1.msra.mxu0 0.0
      %1409 = vmatprep.subr.mxu0 0.0
      %1410 = vmatpush1.msra.mxu0 0.0
      %1411 = vmatprep.subr.mxu0 0.0
      %1412 = vmatpush1.msra.mxu0 0.0
      %1413 = vmatprep.subr.mxu0 0.0
      %1414 = vmatpush1.msra.mxu0 0.0
      %1415 = vmatprep.subr.mxu0 0.0
      %1416 = vmatpush1.msra.mxu0 0.0
      %1417 = vmatprep.subr.mxu0 0.0
      %1418 = vmatpush1.msra.mxu0 0.0
      %1419 = vmatprep.subr.mxu0 0.0
      %1420 = vmatpush1.msra.mxu0 0.0
      %1421 = vmatprep.subr.mxu0 0.0
      %1422 = vmatpush1.msra.mxu0 0.0
      %1423 = vmatprep.subr.mxu0 0.0
      %1424 = vmatpush1.msra.mxu0 0.0
      %1425 = vmatprep.subr.mxu0 0.0
      %1426 = vmatpush1.msra.mxu0 0.0
      %1427 = vmatprep.subr.mxu0 0.0
      %1428 = vmatpush1.msra.mxu0 0.0
      %1429 = vmatprep.subr.mxu0 0.0
      %1430 = vmatpush1.msra.mxu0 0.0
      %1431 = vmatprep.subr.mxu0 0.0
      %1432 = vmatpush1.msra.mxu0 0.0
      %1433 = vmatprep.subr.mxu0 0.0
      %1434 = vmatpush1.msra.mxu0 0.0
      %1435 = vmatprep.subr.mxu0 0.0
      %1436 = vmatpush1.msra.mxu0 0.0
      %1437 = vmatprep.subr.mxu0 0.0
      %1438 = vmatpush1.msra.mxu0 0.0
      %1439 = vmatprep.subr.mxu0 0.0
      %1440 = vmatpush1.msra.mxu0 0.0
      %1441 = vmatprep.subr.mxu0 0.0
      %1442 = vmatpush1.msra.mxu0 0.0
      %1443 = vmatprep.subr.mxu0 0.0
      %1444 = vmatpush1.msra.mxu0 0.0
      %1445 = vmatprep.subr.mxu0 0.0
      %1446 = vmatpush1.msra.mxu0 0.0
      %1447 = vmatprep.subr.mxu0 0.0
      %1448 = vmatpush1.msra.mxu0 0.0
      %1449 = vmatprep.subr.mxu0 0.0
      %1450 = vmatpush1.msra.mxu0 0.0
      %1451 = vmatprep.subr.mxu0 0.0
      %1452 = vmatpush1.msra.mxu0 0.0
      %1453 = vmatprep.subr.mxu0 0.0
      %1454 = vmatpush1.msra.mxu0 0.0
      %1455 = vmatprep.subr.mxu0 0.0
      %1456 = vmatpush1.msra.mxu0 0.0
      %1457 = vmatprep.subr.mxu0 0.0
      %1458 = vmatpush1.msra.mxu0 0.0
      %1459 = vmatprep.subr.mxu0 0.0
      %1460 = vmatpush1.msra.mxu0 0.0
      %1461 = vmatprep.subr.mxu0 0.0
      %1462 = vmatpush1.msra.mxu0 0.0
      %1463 = vmatprep.mubr.f32.mxu0 0.0
      %1464 = vmatmul.mubr.f32.gmra.mrb[0].mxu0 %v267
      %v1465 = vpop.f32.mrb[0].mxu0
      %v1466 = vadd.f32 %v231, %v1465
      %v1467 = vpop.f32.mrb[0].mxu0
      %v1468 = vadd.f32 %v231, %v1467
      %1469 = vdwg.mxu0
      %1470 = vst [vmem:[%s208] sm:$0xff] %v401
      %1471 = vst [vmem:[%s208 + $0x8] sm:$0xff] %v403
      %1472 = vst [vmem:[%s208 + $0x10] sm:$0xff] %v472
      %1473 = vst [vmem:[%s208 + $0x18] sm:$0xff] %v474
      %1474 = vst [vmem:[%s208 + $0x20] sm:$0xff] %v543
      %1475 = vst [vmem:[%s208 + $0x28] sm:$0xff] %v545
      %1476 = vst [vmem:[%s208 + $0x30] sm:$0xff] %v614
      %1477 = vst [vmem:[%s208 + $0x38] sm:$0xff] %v616
      %1478 = vst [vmem:[%s208 + $0x40] sm:$0xff] %v685
      %1479 = vst [vmem:[%s208 + $0x48] sm:$0xff] %v687
      %1480 = vst [vmem:[%s208 + $0x50] sm:$0xff] %v756
      %1481 = vst [vmem:[%s208 + $0x58] sm:$0xff] %v758
      %1482 = vst [vmem:[%s208 + $0x60] sm:$0xff] %v827
      %1483 = vst [vmem:[%s208 + $0x68] sm:$0xff] %v829
      %1484 = vst [vmem:[%s208 + $0x70] sm:$0xff] %v898
      %1485 = vst [vmem:[%s208 + $0x78] sm:$0xff] %v900
      %1486 = vst [vmem:[%s208 + $0x80] sm:$0xff] %v969
      %1487 = vst [vmem:[%s208 + $0x88] sm:$0xff] %v971
      %1488 = vst [vmem:[%s208 + $0x90] sm:$0xff] %v1040
      %1489 = vst [vmem:[%s208 + $0x98] sm:$0xff] %v1042
      %1490 = vst [vmem:[%s208 + $0xa0] sm:$0xff] %v1111
      %1491 = vst [vmem:[%s208 + $0xa8] sm:$0xff] %v1113
      %1492 = vst [vmem:[%s208 + $0xb0] sm:$0xff] %v1182
      %1493 = vst [vmem:[%s208 + $0xb8] sm:$0xff] %v1184
      %1494 = vst [vmem:[%s208 + $0xc0] sm:$0xff] %v1253
      %1495 = vst [vmem:[%s208 + $0xc8] sm:$0xff] %v1255
      %1496 = vst [vmem:[%s208 + $0xd0] sm:$0xff] %v1324
      %1497 = vst [vmem:[%s208 + $0xd8] sm:$0xff] %v1326
      %1498 = vst [vmem:[%s208 + $0xe0] sm:$0xff] %v1395
      %1499 = vst [vmem:[%s208 + $0xe8] sm:$0xff] %v1397
      %1500 = vst [vmem:[%s208 + $0xf0] sm:$0xff] %v1466
      %1501 = vst [vmem:[%s208 + $0xf8] sm:$0xff] %v1468
      %s1502 = smul.u32 32, %s19
      %p1503 = scmp.lt.s32.totalorder %s18, 1
      %s1504 = scalar_select %p1503, %s18, 1
      %p1505 = scmp.lt.s32.totalorder %s1502, 31
      %s1506 = scalar_select %p1505, %s1502, 31
      %s1507 = smul.addr %s1504, 32
      %s1508 = sadd.s32 %s1506, %s1507
      %s1509 = smul.addr %s1508, 8
      %s1510 = scalar_lea.vmem %s3, %s1509
      // Predicated region
      $region33: #{outconv_forward.1} parent=31 // pred_check
        %p1511 = pneg %p116
      $region34: #{outconv_forward.1} parent=31 // pred_check_branch
        %1513 = sbr.rel (%p1511) target = $region36
      $region35: #{outconv_forward.1} parent=31 // pred_region
        %s1514 = smul.u32 32, %s19
      $region36: #{outconv_forward.1} parent=31 // pred_fallthru
        _
    $region32: #{outconv_forward.1} parent=5 // pred_fallthru
      _
    %p1515 = scmp.le.s32.totalorder 2, %s9
    // Predicated region
    $region37: #{outconv_forward.1} parent=5 // pred_check
      %p1516 = pneg %p1515
    $region38: #{outconv_forward.1} parent=5 // pred_check_branch
      %1518 = sbr.rel (%p1516) target = $region40
    $region39: #{outconv_forward.1} parent=5 // pred_region
      %s1519 = ssub.s32 %s9, 2
      // Predicated region
      $region41: #{outconv_forward.1} parent=39 // pred_check
        %p1520 = pneg %p122
      $region42: #{outconv_forward.1} parent=39 // pred_check_branch
        %1522 = sbr.rel (%p1520) target = $region44
      $region43: #{outconv_forward.1} parent=39 // pred_region
        %s1523 = smul.u32 32, %s21
        %p1524 = scmp.lt.s32.totalorder %s20, 1
        %s1525 = scalar_select %p1524, %s20, 1
        %p1526 = scmp.lt.s32.totalorder %s1523, 31
        %s1527 = scalar_select %p1526, %s1523, 31
        %s1528 = smul.addr %s1525, 32
        %s1529 = sadd.s32 %s1527, %s1528
        %s1530 = smul.addr %s1529, 8
        %s1531 = scalar_lea.vmem %s3, %s1530
      $region44: #{outconv_forward.1} parent=39 // pred_fallthru
        _
    $region40: #{outconv_forward.1} parent=5 // pred_fallthru
      _
  $region6: #{outconv_forward.1} parent=0 // loop_footer
    %s13 = sadd.s32 1, %s9
  $region7: #{outconv_forward.1} parent=0 // loop_footer_branch
    %8 = sbr.rel target = $region3
  $region8: #{outconv_forward.1} parent=0 // loop_exit
    _

</llo_original>
